<compile_context>
chip_gen: v7x
topology: tpu7x:2x2x1
jax: 0.10.0
libtpu: 0.0.40
codegen_flags: <defaults>
</compile_context>

<pallas_src>
import functools

import jax
import jax.numpy as jnp
from jax.experimental import pallas as pl
from jax.experimental.pallas import tpu as pltpu


def _leaky_relu(x, slope=0.1):
    return jnp.where(x > 0, x, slope * x)


def _round_up(x, m):
    return (x + m - 1) // m * m


def _res_layer_kernel(x_ref, w1_ref, w2_ref, b_ref, mask_ref, o_ref, pbuf_ref,
                      *, H, W, C_in, C_mid, LPAD):
    """One batch element. x_ref/o_ref: (C_in, H*W) lane-dense tiles."""
    HW = H * W
    cdt = w1_ref.dtype                        # MXU compute dtype (bf16 or f32)

    b1 = b_ref[0:C_mid, :]                    # (C_mid, 1) f32
    b2 = b_ref[C_mid:C_mid + C_in, :]         # (C_in, 1)  f32
    keep_l = mask_ref[0:1, :]                 # (1, HW)    {0,1} in cdt
    keep_r = mask_ref[1:2, :]

    # ---- layer1: 1x1 conv (scale-folded weight) -> +bias -> LeakyReLU ----
    y1 = jnp.dot(w1_ref[...], x_ref[...].astype(cdt),
                 preferred_element_type=jnp.float32)          # (C_mid, HW) f32
    y1 = _leaky_relu(y1 + b1)

    # ---- stage y1 into the padded scratch; zero only the two pad strips ----
    pbuf_ref[:, 0:W + 1] = jnp.zeros((C_mid, W + 1), cdt)
    pbuf_ref[:, W + 1 + HW:LPAD] = jnp.zeros((C_mid, LPAD - (W + 1 + HW)), cdt)
    pbuf_ref[:, W + 1:W + 1 + HW] = y1.astype(cdt)

    # ---- layer2: 3x3 conv (pad=1) as 9 accumulated K=C_mid matmuls ----
    # Each tap is a static lane-shifted view of the padded y1; the horizontal
    # wrap of the flattened spatial axis is fixed by the precomputed masks.
    # TODO(synk): for large C_mid on v6e/v7x, stage the taps into a
    # (9*C_mid, HW) VMEM scratch instead and issue one long-K matmul.
    y2 = None
    for ky in range(3):
        for kx in range(3):
            t = ky * 3 + kx
            start = ky * W + kx                               # static per tap
            tap = pbuf_ref[:, start:start + HW]               # (C_mid, HW) cdt
            if kx == 0:
                tap = tap * keep_l
            elif kx == 2:
                tap = tap * keep_r
            w_tap = w2_ref[:, t * C_mid:(t + 1) * C_mid]      # (C_in, C_mid)
            part = jnp.dot(w_tap, tap, preferred_element_type=jnp.float32)
            y2 = part if y2 is None else y2 + part
    y2 = _leaky_relu(y2 + b2)                                 # (C_in, HW) f32

    # ---- residual add (x re-read here -> short live range), dense store ----
    o_ref[...] = (x_ref[...].astype(jnp.float32) + y2).astype(o_ref.dtype)


def res_layer_pallas(x_nchw, w1_mat, w2_packed, bias, *,
                     compute_dtype=jnp.bfloat16):
    """x_nchw:   (N, C_in, H, W)   PyTorch NCHW layout, used directly.
    w1_mat:    (C_mid, C_in)      conv1 1x1 weight with BN1 scale folded in.
    w2_packed: (C_in, 9*C_mid)    conv2 3x3 weight, tap-major, BN2 scale folded.
    bias:      (C_mid + C_in, 1)  folded BN biases (layer1 rows then layer2)."""
    N, C_in, H, W = x_nchw.shape
    C_mid = w1_mat.shape[0]
    HW = H * W
    LPAD = _round_up(HW + 2 * (W + 1), 128)

    # NCHW is contiguous as (N, C, H*W): bit-identical view, lane dim = H*W.
    x_flat = x_nchw.reshape(N, C_in, HW)

    w1 = w1_mat.astype(compute_dtype)
    w2 = w2_packed.astype(compute_dtype)
    bias = bias.astype(jnp.float32)

    # Precomputed horizontal-wrap masks: row 0 kills output column x==0 (left
    # taps), row 1 kills x==W-1 (right taps).
    xpos = jnp.arange(HW, dtype=jnp.int32) % W
    mask_lr = jnp.stack([xpos != 0, xpos != W - 1]).astype(compute_dtype)

    kernel = functools.partial(_res_layer_kernel, H=H, W=W,
                               C_in=C_in, C_mid=C_mid, LPAD=LPAD)

    cbytes = jnp.dtype(compute_dtype).itemsize
    ibytes = jnp.dtype(x_nchw.dtype).itemsize
    # Rough per-step VMEM footprint: double-buffered operands + scratch.
    est = (2 * (2 * C_in * HW * ibytes                         # x + out blocks
                + 10 * C_mid * C_in * cbytes                   # w1 + w2
                + (C_mid + C_in) * 4 + 2 * HW * cbytes)        # bias + masks
           + C_mid * LPAD * cbytes)                            # padded scratch
    vmem_limit = int(min(max(4 * est, 32 * 1024 * 1024), 48 * 1024 * 1024))

    # TODO(synk): for production YOLOX shapes (large C / H*W) add a spatial
    # row-tile grid axis with a +/-1-row halo and single-buffer the constant
    # weight operands; the whole-image tile here targets small test shapes.
    out = pl.pallas_call(
        kernel,
        out_shape=jax.ShapeDtypeStruct((N, C_in, HW), x_nchw.dtype),
        grid_spec=pltpu.PrefetchScalarGridSpec(
            num_scalar_prefetch=0,
            grid=(N,),
            in_specs=[
                pl.BlockSpec((pl.Squeezed(), C_in, HW), lambda n: (n, 0, 0)),
                pl.BlockSpec((C_mid, C_in), lambda n: (0, 0)),
                pl.BlockSpec((C_in, 9 * C_mid), lambda n: (0, 0)),
                pl.BlockSpec((C_mid + C_in, 1), lambda n: (0, 0)),
                pl.BlockSpec((2, HW), lambda n: (0, 0)),
            ],
            out_specs=pl.BlockSpec((pl.Squeezed(), C_in, HW),
                                   lambda n: (n, 0, 0)),
            scratch_shapes=[pltpu.VMEM((C_mid, LPAD), compute_dtype)],
        ),
        compiler_params=pltpu.CompilerParams(
            dimension_semantics=("parallel",),
            vmem_limit_bytes=vmem_limit),
    )(x_flat, w1, w2, bias, mask_lr)
    return out.reshape(N, C_in, H, W)


def _bn_fold(gamma, beta, mean, var, eps=1e-5):
    scale = gamma / jnp.sqrt(var + eps)
    bias = beta - mean * scale
    return scale, bias


def pack_res_layer_params(conv1_w, conv2_w, s1, b1, s2, b2):
    """Fold BN scales into the conv weights and pack kernel operands."""
    C_mid = conv1_w.shape[0]
    C_in = conv1_w.shape[1]
    w1 = s1[:, None] * conv1_w[:, :, 0, 0]                        # (C_mid, C_in)
    # (C_in, C_mid, 3, 3) -> (C_in, ky, kx, C_mid) -> (C_in, 9*C_mid), tap-major
    w2 = jnp.transpose(conv2_w, (0, 2, 3, 1)).reshape(C_in, 9 * C_mid)
    w2 = s2[:, None] * w2
    bias = jnp.concatenate([b1, b2])[:, None]                     # (C_mid+C_in, 1)
    return w1, w2, bias


def _reference(x_nchw, conv1_w, s1, b1, conv2_w, s2, b2):
    """Plain-JAX f32 reference of the same forward (NCHW)."""
    y = jax.lax.conv_general_dilated(
        x_nchw, conv1_w, window_strides=(1, 1), padding="SAME",
        dimension_numbers=("NCHW", "OIHW", "NCHW"))
    y = y * s1[None, :, None, None] + b1[None, :, None, None]
    y = jnp.where(y > 0, y, 0.1 * y)
    z = jax.lax.conv_general_dilated(
        y, conv2_w, window_strides=(1, 1), padding="SAME",
        dimension_numbers=("NCHW", "OIHW", "NCHW"))
    z = z * s2[None, :, None, None] + b2[None, :, None, None]
    z = jnp.where(z > 0, z, 0.1 * z)
    return x_nchw + z


if __name__ == "__main__":
    N, C_in, H, W = 2, 8, 16, 16
    C_mid = C_in // 2

    key = jax.random.PRNGKey(0)
    keys = jax.random.split(key, 12)

    x_nchw = jax.random.normal(keys[0], (N, C_in, H, W), dtype=jnp.float32)

    # conv weights (PyTorch OIHW convention, bias=False)
    conv1_w = 0.2 * jax.random.normal(keys[1], (C_mid, C_in, 1, 1), jnp.float32)
    conv2_w = 0.1 * jax.random.normal(keys[2], (C_in, C_mid, 3, 3), jnp.float32)

    # BatchNorm params (gamma, beta, running_mean, running_var), eval-mode fold
    g1 = 1.0 + 0.1 * jax.random.normal(keys[3], (C_mid,), jnp.float32)
    be1 = 0.1 * jax.random.normal(keys[4], (C_mid,), jnp.float32)
    m1 = 0.05 * jax.random.normal(keys[5], (C_mid,), jnp.float32)
    v1 = 1.0 + 0.1 * jax.random.uniform(keys[6], (C_mid,), jnp.float32)
    g2 = 1.0 + 0.1 * jax.random.normal(keys[7], (C_in,), jnp.float32)
    be2 = 0.1 * jax.random.normal(keys[8], (C_in,), jnp.float32)
    m2 = 0.05 * jax.random.normal(keys[9], (C_in,), jnp.float32)
    v2 = 1.0 + 0.1 * jax.random.uniform(keys[10], (C_in,), jnp.float32)

    s1, b1 = _bn_fold(g1, be1, m1, v1)
    s2, b2 = _bn_fold(g2, be2, m2, v2)

    w1_mat, w2_packed, bias = pack_res_layer_params(conv1_w, conv2_w,
                                                    s1, b1, s2, b2)
    ref = _reference(x_nchw, conv1_w, s1, b1, conv2_w, s2, b2)

    # Primary (perf) path: bf16 MXU, f32 accumulation -> bf16-level tolerance.
    out_bf16 = res_layer_pallas(x_nchw, w1_mat, w2_packed, bias,
                                compute_dtype=jnp.bfloat16)
    out_bf16 = jax.block_until_ready(out_bf16)
    assert jnp.allclose(out_bf16, ref, atol=4e-2, rtol=4e-2), (
        float(jnp.max(jnp.abs(out_bf16 - ref))))

    # Full-precision path of the same kernel -> tight tolerance.
    out_f32 = res_layer_pallas(x_nchw, w1_mat, w2_packed, bias,
                               compute_dtype=jnp.float32)
    out_f32 = jax.block_until_ready(out_f32)
    assert jnp.allclose(out_f32, ref, atol=1e-4, rtol=1e-4), (
        float(jnp.max(jnp.abs(out_f32 - ref))))

    print("KERNEL_OK")
</pallas_src>

<mosaic_0001>
module attributes {stable_mosaic.version = 11 : i64} {
  func.func @_res_layer_kernel(%arg0: i32, %arg1: memref<1x8x256xf32, #tpu.memory_space<vmem>>, %arg2: memref<4x8xbf16, #tpu.memory_space<vmem>>, %arg3: memref<8x36xbf16, #tpu.memory_space<vmem>>, %arg4: memref<12x1xf32, #tpu.memory_space<vmem>>, %arg5: memref<2x256xbf16, #tpu.memory_space<vmem>>, %arg6: memref<1x8x256xf32, #tpu.memory_space<vmem>>, %arg7: memref<4x384xbf16, #tpu.memory_space<vmem>>) attributes {dimension_semantics = [#tpu.dimension_semantics<parallel>], iteration_bounds = array<i64: 2>, scalar_prefetch = 0 : i64, scratch_operands = 1 : i64, tpu.core_type = #tpu.core_type<tc>, window_params = [{transform_indices = @transform_0, window_bounds = array<i64: 1, 8, 256>}, {pipeline_mode = #tpu.pipeline_mode<synchronous>, transform_indices = @transform_1, window_bounds = array<i64: 4, 8>}, {pipeline_mode = #tpu.pipeline_mode<synchronous>, transform_indices = @transform_2, window_bounds = array<i64: 8, 36>}, {pipeline_mode = #tpu.pipeline_mode<synchronous>, transform_indices = @transform_3, window_bounds = array<i64: 12, 1>}, {pipeline_mode = #tpu.pipeline_mode<synchronous>, transform_indices = @transform_4, window_bounds = array<i64: 2, 256>}, {transform_indices = @transform_5, window_bounds = array<i64: 1, 8, 256>}]} {
    %c0 = arith.constant 0 : index
    %c0_0 = arith.constant 0 : index
    %0 = vector.load %arg4[%c0, %c0_0] : memref<12x1xf32, #tpu.memory_space<vmem>>, vector<4x1xf32>
    %c4 = arith.constant 4 : index
    %c0_1 = arith.constant 0 : index
    %1 = vector.load %arg4[%c4, %c0_1] : memref<12x1xf32, #tpu.memory_space<vmem>>, vector<8x1xf32>
    %c0_2 = arith.constant 0 : index
    %c0_3 = arith.constant 0 : index
    %2 = vector.load %arg5[%c0_2, %c0_3] : memref<2x256xbf16, #tpu.memory_space<vmem>>, vector<1x256xbf16>
    %c1 = arith.constant 1 : index
    %c0_4 = arith.constant 0 : index
    %3 = vector.load %arg5[%c1, %c0_4] : memref<2x256xbf16, #tpu.memory_space<vmem>>, vector<1x256xbf16>
    %c0_5 = arith.constant 0 : index
    %c0_6 = arith.constant 0 : index
    %4 = vector.load %arg2[%c0_5, %c0_6] : memref<4x8xbf16, #tpu.memory_space<vmem>>, vector<4x8xbf16>
    %c0_7 = arith.constant 0 : index
    %c0_8 = arith.constant 0 : index
    %c0_9 = arith.constant 0 : index
    %5 = vector.load %arg1[%c0_7, %c0_8, %c0_9] : memref<1x8x256xf32, #tpu.memory_space<vmem>>, vector<1x8x256xf32>
    %6 = vector.shape_cast %5 : vector<1x8x256xf32> to vector<8x256xf32>
    %7 = arith.truncf %6 : vector<8x256xf32> to vector<8x256xbf16>
    %cst = arith.constant dense<0.000000e+00> : vector<4x256xf32>
    %8 = tpu.matmul %4, %7, %cst {dimension_numbers = #tpu.dot_dimension_numbers<[1], [0], [0], [1], [0, 0, 1, 1], [], []>} : vector<4x8xbf16>, vector<8x256xbf16>, vector<4x256xf32> -> vector<4x256xf32>
    %9 = vector.broadcast %0 : vector<4x1xf32> to vector<4x256xf32>
    %10 = arith.addf %8, %9 : vector<4x256xf32>
    %cst_10 = arith.constant 0.000000e+00 : f32
    %11 = vector.broadcast %cst_10 : f32 to vector<4x256xf32>
    %12 = arith.cmpf ogt, %10, %11 : vector<4x256xf32>
    %cst_11 = arith.constant 1.000000e-01 : f32
    %13 = vector.broadcast %cst_11 : f32 to vector<4x256xf32>
    %14 = arith.mulf %13, %10 : vector<4x256xf32>
    %15 = arith.select %12, %10, %14 : vector<4x256xi1>, vector<4x256xf32>
    %cst_12 = arith.constant 0.000000e+00 : bf16
    %16 = vector.broadcast %cst_12 : bf16 to vector<4x17xbf16>
    %c0_13 = arith.constant 0 : index
    %c0_14 = arith.constant 0 : index
    %17 = vector.load %arg7[%c0_13, %c0_14] : memref<4x384xbf16, #tpu.memory_space<vmem>>, vector<4x17xbf16>
    tpu.vector_store %arg7[%c0_13, %c0_14], %16 {strides = array<i32>} : memref<4x384xbf16, #tpu.memory_space<vmem>>, vector<4x17xbf16>,
    %cst_15 = arith.constant 0.000000e+00 : bf16
    %18 = vector.broadcast %cst_15 : bf16 to vector<4x111xbf16>
    %c0_16 = arith.constant 0 : index
    %c273 = arith.constant 273 : index
    %19 = vector.load %arg7[%c0_16, %c273] : memref<4x384xbf16, #tpu.memory_space<vmem>>, vector<4x111xbf16>
    tpu.vector_store %arg7[%c0_16, %c273], %18 {strides = array<i32>} : memref<4x384xbf16, #tpu.memory_space<vmem>>, vector<4x111xbf16>,
    %20 = arith.truncf %15 : vector<4x256xf32> to vector<4x256xbf16>
    %c0_17 = arith.constant 0 : index
    %c17 = arith.constant 17 : index
    %21 = vector.load %arg7[%c0_17, %c17] : memref<4x384xbf16, #tpu.memory_space<vmem>>, vector<4x256xbf16>
    tpu.vector_store %arg7[%c0_17, %c17], %20 {strides = array<i32>} : memref<4x384xbf16, #tpu.memory_space<vmem>>, vector<4x256xbf16>,
    %c0_18 = arith.constant 0 : index
    %c0_19 = arith.constant 0 : index
    %22 = vector.load %arg7[%c0_18, %c0_19] : memref<4x384xbf16, #tpu.memory_space<vmem>>, vector<4x256xbf16>
    %23 = vector.broadcast %2 : vector<1x256xbf16> to vector<4x256xbf16>
    %24 = arith.mulf %22, %23 : vector<4x256xbf16>
    %c0_20 = arith.constant 0 : index
    %c0_21 = arith.constant 0 : index
    %25 = vector.load %arg3[%c0_20, %c0_21] : memref<8x36xbf16, #tpu.memory_space<vmem>>, vector<8x4xbf16>
    %cst_22 = arith.constant dense<0.000000e+00> : vector<8x256xf32>
    %26 = tpu.matmul %25, %24, %cst_22 {dimension_numbers = #tpu.dot_dimension_numbers<[1], [0], [0], [1], [0, 0, 1, 1], [], []>} : vector<8x4xbf16>, vector<4x256xbf16>, vector<8x256xf32> -> vector<8x256xf32>
    %c0_23 = arith.constant 0 : index
    %c1_24 = arith.constant 1 : index
    %27 = vector.load %arg7[%c0_23, %c1_24] : memref<4x384xbf16, #tpu.memory_space<vmem>>, vector<4x256xbf16>
    %c0_25 = arith.constant 0 : index
    %c4_26 = arith.constant 4 : index
    %28 = vector.load %arg3[%c0_25, %c4_26] : memref<8x36xbf16, #tpu.memory_space<vmem>>, vector<8x4xbf16>
    %cst_27 = arith.constant dense<0.000000e+00> : vector<8x256xf32>
    %29 = tpu.matmul %28, %27, %cst_27 {dimension_numbers = #tpu.dot_dimension_numbers<[1], [0], [0], [1], [0, 0, 1, 1], [], []>} : vector<8x4xbf16>, vector<4x256xbf16>, vector<8x256xf32> -> vector<8x256xf32>
    %30 = arith.addf %26, %29 : vector<8x256xf32>
    %c0_28 = arith.constant 0 : index
    %c2 = arith.constant 2 : index
    %31 = vector.load %arg7[%c0_28, %c2] : memref<4x384xbf16, #tpu.memory_space<vmem>>, vector<4x256xbf16>
    %32 = vector.broadcast %3 : vector<1x256xbf16> to vector<4x256xbf16>
    %33 = arith.mulf %31, %32 : vector<4x256xbf16>
    %c0_29 = arith.constant 0 : index
    %c8 = arith.constant 8 : index
    %34 = vector.load %arg3[%c0_29, %c8] : memref<8x36xbf16, #tpu.memory_space<vmem>>, vector<8x4xbf16>
    %cst_30 = arith.constant dense<0.000000e+00> : vector<8x256xf32>
    %35 = tpu.matmul %34, %33, %cst_30 {dimension_numbers = #tpu.dot_dimension_numbers<[1], [0], [0], [1], [0, 0, 1, 1], [], []>} : vector<8x4xbf16>, vector<4x256xbf16>, vector<8x256xf32> -> vector<8x256xf32>
    %36 = arith.addf %30, %35 : vector<8x256xf32>
    %c0_31 = arith.constant 0 : index
    %c16 = arith.constant 16 : index
    %37 = vector.load %arg7[%c0_31, %c16] : memref<4x384xbf16, #tpu.memory_space<vmem>>, vector<4x256xbf16>
    %38 = vector.broadcast %2 : vector<1x256xbf16> to vector<4x256xbf16>
    %39 = arith.mulf %37, %38 : vector<4x256xbf16>
    %c0_32 = arith.constant 0 : index
    %c12 = arith.constant 12 : index
    %40 = vector.load %arg3[%c0_32, %c12] : memref<8x36xbf16, #tpu.memory_space<vmem>>, vector<8x4xbf16>
    %cst_33 = arith.constant dense<0.000000e+00> : vector<8x256xf32>
    %41 = tpu.matmul %40, %39, %cst_33 {dimension_numbers = #tpu.dot_dimension_numbers<[1], [0], [0], [1], [0, 0, 1, 1], [], []>} : vector<8x4xbf16>, vector<4x256xbf16>, vector<8x256xf32> -> vector<8x256xf32>
    %42 = arith.addf %36, %41 : vector<8x256xf32>
    %c0_34 = arith.constant 0 : index
    %c17_35 = arith.constant 17 : index
    %43 = vector.load %arg7[%c0_34, %c17_35] : memref<4x384xbf16, #tpu.memory_space<vmem>>, vector<4x256xbf16>
    %c0_36 = arith.constant 0 : index
    %c16_37 = arith.constant 16 : index
    %44 = vector.load %arg3[%c0_36, %c16_37] : memref<8x36xbf16, #tpu.memory_space<vmem>>, vector<8x4xbf16>
    %cst_38 = arith.constant dense<0.000000e+00> : vector<8x256xf32>
    %45 = tpu.matmul %44, %43, %cst_38 {dimension_numbers = #tpu.dot_dimension_numbers<[1], [0], [0], [1], [0, 0, 1, 1], [], []>} : vector<8x4xbf16>, vector<4x256xbf16>, vector<8x256xf32> -> vector<8x256xf32>
    %46 = arith.addf %42, %45 : vector<8x256xf32>
    %c0_39 = arith.constant 0 : index
    %c18 = arith.constant 18 : index
    %47 = vector.load %arg7[%c0_39, %c18] : memref<4x384xbf16, #tpu.memory_space<vmem>>, vector<4x256xbf16>
    %48 = vector.broadcast %3 : vector<1x256xbf16> to vector<4x256xbf16>
    %49 = arith.mulf %47, %48 : vector<4x256xbf16>
    %c0_40 = arith.constant 0 : index
    %c20 = arith.constant 20 : index
    %50 = vector.load %arg3[%c0_40, %c20] : memref<8x36xbf16, #tpu.memory_space<vmem>>, vector<8x4xbf16>
    %cst_41 = arith.constant dense<0.000000e+00> : vector<8x256xf32>
    %51 = tpu.matmul %50, %49, %cst_41 {dimension_numbers = #tpu.dot_dimension_numbers<[1], [0], [0], [1], [0, 0, 1, 1], [], []>} : vector<8x4xbf16>, vector<4x256xbf16>, vector<8x256xf32> -> vector<8x256xf32>
    %52 = arith.addf %46, %51 : vector<8x256xf32>
    %c0_42 = arith.constant 0 : index
    %c32 = arith.constant 32 : index
    %53 = vector.load %arg7[%c0_42, %c32] : memref<4x384xbf16, #tpu.memory_space<vmem>>, vector<4x256xbf16>
    %54 = vector.broadcast %2 : vector<1x256xbf16> to vector<4x256xbf16>
    %55 = arith.mulf %53, %54 : vector<4x256xbf16>
    %c0_43 = arith.constant 0 : index
    %c24 = arith.constant 24 : index
    %56 = vector.load %arg3[%c0_43, %c24] : memref<8x36xbf16, #tpu.memory_space<vmem>>, vector<8x4xbf16>
    %cst_44 = arith.constant dense<0.000000e+00> : vector<8x256xf32>
    %57 = tpu.matmul %56, %55, %cst_44 {dimension_numbers = #tpu.dot_dimension_numbers<[1], [0], [0], [1], [0, 0, 1, 1], [], []>} : vector<8x4xbf16>, vector<4x256xbf16>, vector<8x256xf32> -> vector<8x256xf32>
    %58 = arith.addf %52, %57 : vector<8x256xf32>
    %c0_45 = arith.constant 0 : index
    %c33 = arith.constant 33 : index
    %59 = vector.load %arg7[%c0_45, %c33] : memref<4x384xbf16, #tpu.memory_space<vmem>>, vector<4x256xbf16>
    %c0_46 = arith.constant 0 : index
    %c28 = arith.constant 28 : index
    %60 = vector.load %arg3[%c0_46, %c28] : memref<8x36xbf16, #tpu.memory_space<vmem>>, vector<8x4xbf16>
    %cst_47 = arith.constant dense<0.000000e+00> : vector<8x256xf32>
    %61 = tpu.matmul %60, %59, %cst_47 {dimension_numbers = #tpu.dot_dimension_numbers<[1], [0], [0], [1], [0, 0, 1, 1], [], []>} : vector<8x4xbf16>, vector<4x256xbf16>, vector<8x256xf32> -> vector<8x256xf32>
    %62 = arith.addf %58, %61 : vector<8x256xf32>
    %c0_48 = arith.constant 0 : index
    %c34 = arith.constant 34 : index
    %63 = vector.load %arg7[%c0_48, %c34] : memref<4x384xbf16, #tpu.memory_space<vmem>>, vector<4x256xbf16>
    %64 = vector.broadcast %3 : vector<1x256xbf16> to vector<4x256xbf16>
    %65 = arith.mulf %63, %64 : vector<4x256xbf16>
    %c0_49 = arith.constant 0 : index
    %c32_50 = arith.constant 32 : index
    %66 = vector.load %arg3[%c0_49, %c32_50] : memref<8x36xbf16, #tpu.memory_space<vmem>>, vector<8x4xbf16>
    %cst_51 = arith.constant dense<0.000000e+00> : vector<8x256xf32>
    %67 = tpu.matmul %66, %65, %cst_51 {dimension_numbers = #tpu.dot_dimension_numbers<[1], [0], [0], [1], [0, 0, 1, 1], [], []>} : vector<8x4xbf16>, vector<4x256xbf16>, vector<8x256xf32> -> vector<8x256xf32>
    %68 = arith.addf %62, %67 : vector<8x256xf32>
    %69 = vector.broadcast %1 : vector<8x1xf32> to vector<8x256xf32>
    %70 = arith.addf %68, %69 : vector<8x256xf32>
    %cst_52 = arith.constant 0.000000e+00 : f32
    %71 = vector.broadcast %cst_52 : f32 to vector<8x256xf32>
    %72 = arith.cmpf ogt, %70, %71 : vector<8x256xf32>
    %cst_53 = arith.constant 1.000000e-01 : f32
    %73 = vector.broadcast %cst_53 : f32 to vector<8x256xf32>
    %74 = arith.mulf %73, %70 : vector<8x256xf32>
    %75 = arith.select %72, %70, %74 : vector<8x256xi1>, vector<8x256xf32>
    %c0_54 = arith.constant 0 : index
    %c0_55 = arith.constant 0 : index
    %c0_56 = arith.constant 0 : index
    %76 = vector.load %arg1[%c0_54, %c0_55, %c0_56] : memref<1x8x256xf32, #tpu.memory_space<vmem>>, vector<1x8x256xf32>
    %77 = vector.shape_cast %76 : vector<1x8x256xf32> to vector<8x256xf32>
    %78 = arith.addf %77, %75 : vector<8x256xf32>
    %c0_57 = arith.constant 0 : index
    %c0_58 = arith.constant 0 : index
    %c0_59 = arith.constant 0 : index
    %79 = vector.load %arg6[%c0_57, %c0_58, %c0_59] : memref<1x8x256xf32, #tpu.memory_space<vmem>>, vector<1x8x256xf32>
    %80 = vector.shape_cast %79 : vector<1x8x256xf32> to vector<8x256xf32>
    %81 = vector.shape_cast %78 : vector<8x256xf32> to vector<1x8x256xf32>
    tpu.vector_store %arg6[%c0_57, %c0_58, %c0_59], %81 {strides = array<i32>} : memref<1x8x256xf32, #tpu.memory_space<vmem>>, vector<1x8x256xf32>,
    return
  }
  func.func @transform_0(%arg0: i32) -> (i32, i32, i32) {
    %c0_i32 = arith.constant 0 : i32
    %c0_i32_0 = arith.constant 0 : i32
    %c0_i32_1 = arith.constant 0 : i32
    return %arg0, %c0_i32, %c0_i32_0 : i32, i32, i32
  }
  func.func @transform_1(%arg0: i32) -> (i32, i32) {
    %c0_i32 = arith.constant 0 : i32
    %c0_i32_0 = arith.constant 0 : i32
    %c0_i32_1 = arith.constant 0 : i32
    return %c0_i32, %c0_i32_0 : i32, i32
  }
  func.func @transform_2(%arg0: i32) -> (i32, i32) {
    %c0_i32 = arith.constant 0 : i32
    %c0_i32_0 = arith.constant 0 : i32
    %c0_i32_1 = arith.constant 0 : i32
    return %c0_i32, %c0_i32_0 : i32, i32
  }
  func.func @transform_3(%arg0: i32) -> (i32, i32) {
    %c0_i32 = arith.constant 0 : i32
    %c0_i32_0 = arith.constant 0 : i32
    %c0_i32_1 = arith.constant 0 : i32
    return %c0_i32, %c0_i32_0 : i32, i32
  }
  func.func @transform_4(%arg0: i32) -> (i32, i32) {
    %c0_i32 = arith.constant 0 : i32
    %c0_i32_0 = arith.constant 0 : i32
    %c0_i32_1 = arith.constant 0 : i32
    return %c0_i32, %c0_i32_0 : i32, i32
  }
  func.func @transform_5(%arg0: i32) -> (i32, i32, i32) {
    %c0_i32 = arith.constant 0 : i32
    %c0_i32_0 = arith.constant 0 : i32
    %c0_i32_1 = arith.constant 0 : i32
    return %arg0, %c0_i32, %c0_i32_0 : i32, i32, i32
  }
}

</mosaic_0001>

<llo_original>
// kernel: tpu_custom_call.1
$region0: #{tpu_custom_call.1}
  #allocation0 [shape = 'u32[]', space=smem, size = 0x4, offset = 0x4, fixed_abs, tag = 'smem constant byte address 0x4 - core index']
  #allocation1 [shape = 'u32[144,128]{1,0:T(1,128)}', space=vmem, size = 0x12000, scoped, tag = 'internal scratch']
  #allocation2 [shape = 'bf16[4,384]{1,0:T(4,128)(2,1)}', space=vmem, size = 0xc00, scoped, tag = 'scratch operand']
  %s0 = inlined_call_operand.hbm [shape: f32[2,8,256], index: 0, kind: input, shape index: {}]
  %s1 = inlined_call_operand.vmem [shape: bf16[4,8], index: 1, kind: input, shape index: {}]
  %s2 = inlined_call_operand.vmem [shape: bf16[8,36], index: 2, kind: input, shape index: {}]
  %s3 = inlined_call_operand.vmem [shape: f32[12,1], index: 3, kind: input, shape index: {}]
  %s4 = inlined_call_operand.vmem [shape: bf16[2,256], index: 4, kind: input, shape index: {}]
  %s5 = inlined_call_operand.hbm [shape: f32[2,8,256], index: 5, kind: output, shape index: {}]
  %s6 = sld [smem:[#allocation0]]
  $region57: #{tpu_custom_call.1} parent=0
    _
  %s8 = ssub.s32 1, %s6
  %s9 = scalar_select 0, %s8, %s6
  $region1: #{tpu_custom_call.1} parent=0
    #allocation3 [shape = 'u8[16384]{0}', space=vmem, size = 0x4000, scoped, tag = 'input window, operand 0']
    #allocation4 [shape = 's32[2]{0}', space=sflag, size = 0x8, scoped, tag = 'scoped memory for tpu_custom_call.1']
    #allocation5 [shape = 's32[2]{0}', space=sflag, size = 0x8, scoped, tag = 'scoped memory for tpu_custom_call.1']
    #allocation6 [shape = 'u8[16384]{0}', space=vmem, size = 0x4000, scoped, tag = 'output window, operand 0']
    %10 = vsyncpa [#allocation4], 0
    %s11 = scalar_lea.sflag [#allocation4], 1
    %12 = vsyncpa %s11, 0
    %13 = vsyncpa [#allocation5], 0
    %s14 = scalar_lea.sflag [#allocation5], 1
    %15 = vsyncpa %s14, 0
    loop: start=0, step=1, limit=4
    $region2: #{tpu_custom_call.1} parent=1 // loop_pre_header
      _
    $region3: #{tpu_custom_call.1} parent=1 // loop_header
      %s17 = sphi 0, %s21
      %p18 = scmp.ge.s32.totalorder %s17, 4
      %s27 = sphi 0, %s29
      %s30 = sphi 0, %s27
      %s31 = sphi 0, %s30
      %s47 = sphi 0, %s31
      %s51 = sphi 0, %s51
      %s53 = sphi 0, %s51
      %s54 = sphi 0, %s53
      %s68 = sphi 0, %s54
      %s72 = sphi 0, %s72
      %s74 = sphi 0, %s72
      %s75 = sphi 0, %s74
      %s89 = sphi 0, %s75
      %s93 = sphi 0, %s93
      %s95 = sphi 0, %s93
      %s96 = sphi 0, %s95
      %s110 = sphi 0, %s96
      %s114 = sphi 0, %s114
      %s116 = sphi 0, %s114
      %s117 = sphi 0, %s116
      %s131 = sphi 0, %s117
      %s137 = sphi 0, %s139
      %s140 = sphi 0, %s137
      %s141 = sphi 0, %s140
      %s157 = sphi 0, %s141
    $region4: #{tpu_custom_call.1} parent=1 // loop_header_branch
      %20 = sbr.rel (%p18) target = $region8
    $region5: #{tpu_custom_call.1} parent=1 // loop_body
      %s22 = ssub.s32 %s17, 1
      %s23 = ssub.s32 %s17, 2
      %s24 = sadd.s32 %s17, 1
      %s25 = ssub.s32 %s17, %s24
      %p26 = scmp.eq.s32.totalorder %s25, 0
      %s28 = sadd.s32 %s27, 1
      %s29 = scalar_select %p26, %s27, %s28
      %p32 = pneg %p26
      %p33 = scmp.eq.s32.totalorder %s17, 1
      %p34 = por %p32, %p33
      %p35 = scmp.ne.s32.totalorder %s27, %s30
      %p36 = scmp.eq.s32.totalorder %s17, 0
      %p37 = por %p35, %p36
      %p38 = scmp.ne.s32.totalorder %s27, %s30
      %p39 = scmp.eq.s32.totalorder %s22, 1
      %p40 = por %p38, %p39
      %p41 = scmp.ne.s32.totalorder %s30, %s31
      %p42 = scmp.eq.s32.totalorder %s22, 0
      %p43 = por %p41, %p42
      %p44 = scmp.ne.s32.totalorder %s30, %s31
      %p45 = scmp.eq.s32.totalorder %s23, 1
      %p46 = por %p44, %p45
      %p48 = scmp.ne.s32.totalorder %s31, %s47
      %p49 = scmp.eq.s32.totalorder %s23, 0
      %p50 = por %p48, %p49
      %s52 = sadd.s32 %s51, 1
      %p55 = scmp.eq.s32.totalorder %s17, 1
      %p56 = scmp.ne.s32.totalorder %s51, %s53
      %p57 = scmp.eq.s32.totalorder %s17, 0
      %p58 = por %p56, %p57
      %p59 = scmp.ne.s32.totalorder %s51, %s53
      %p60 = scmp.eq.s32.totalorder %s22, 1
      %p61 = por %p59, %p60
      %p62 = scmp.ne.s32.totalorder %s53, %s54
      %p63 = scmp.eq.s32.totalorder %s22, 0
      %p64 = por %p62, %p63
      %p65 = scmp.ne.s32.totalorder %s53, %s54
      %p66 = scmp.eq.s32.totalorder %s23, 1
      %p67 = por %p65, %p66
      %p69 = scmp.ne.s32.totalorder %s54, %s68
      %p70 = scmp.eq.s32.totalorder %s23, 0
      %p71 = por %p69, %p70
      %s73 = sadd.s32 %s72, 1
      %p76 = scmp.eq.s32.totalorder %s17, 1
      %p77 = scmp.ne.s32.totalorder %s72, %s74
      %p78 = scmp.eq.s32.totalorder %s17, 0
      %p79 = por %p77, %p78
      %p80 = scmp.ne.s32.totalorder %s72, %s74
      %p81 = scmp.eq.s32.totalorder %s22, 1
      %p82 = por %p80, %p81
      %p83 = scmp.ne.s32.totalorder %s74, %s75
      %p84 = scmp.eq.s32.totalorder %s22, 0
      %p85 = por %p83, %p84
      %p86 = scmp.ne.s32.totalorder %s74, %s75
      %p87 = scmp.eq.s32.totalorder %s23, 1
      %p88 = por %p86, %p87
      %p90 = scmp.ne.s32.totalorder %s75, %s89
      %p91 = scmp.eq.s32.totalorder %s23, 0
      %p92 = por %p90, %p91
      %s94 = sadd.s32 %s93, 1
      %p97 = scmp.eq.s32.totalorder %s17, 1
      %p98 = scmp.ne.s32.totalorder %s93, %s95
      %p99 = scmp.eq.s32.totalorder %s17, 0
      %p100 = por %p98, %p99
      %p101 = scmp.ne.s32.totalorder %s93, %s95
      %p102 = scmp.eq.s32.totalorder %s22, 1
      %p103 = por %p101, %p102
      %p104 = scmp.ne.s32.totalorder %s95, %s96
      %p105 = scmp.eq.s32.totalorder %s22, 0
      %p106 = por %p104, %p105
      %p107 = scmp.ne.s32.totalorder %s95, %s96
      %p108 = scmp.eq.s32.totalorder %s23, 1
      %p109 = por %p107, %p108
      %p111 = scmp.ne.s32.totalorder %s96, %s110
      %p112 = scmp.eq.s32.totalorder %s23, 0
      %p113 = por %p111, %p112
      %s115 = sadd.s32 %s114, 1
      %p118 = scmp.eq.s32.totalorder %s17, 1
      %p119 = scmp.ne.s32.totalorder %s114, %s116
      %p120 = scmp.eq.s32.totalorder %s17, 0
      %p121 = por %p119, %p120
      %p122 = scmp.ne.s32.totalorder %s114, %s116
      %p123 = scmp.eq.s32.totalorder %s22, 1
      %p124 = por %p122, %p123
      %p125 = scmp.ne.s32.totalorder %s116, %s117
      %p126 = scmp.eq.s32.totalorder %s22, 0
      %p127 = por %p125, %p126
      %p128 = scmp.ne.s32.totalorder %s116, %s117
      %p129 = scmp.eq.s32.totalorder %s23, 1
      %p130 = por %p128, %p129
      %p132 = scmp.ne.s32.totalorder %s117, %s131
      %p133 = scmp.eq.s32.totalorder %s23, 0
      %p134 = por %p132, %p133
      %s135 = ssub.s32 %s17, %s24
      %p136 = scmp.eq.s32.totalorder %s135, 0
      %s138 = sadd.s32 %s137, 1
      %s139 = scalar_select %p136, %s137, %s138
      %p142 = pneg %p136
      %p143 = scmp.eq.s32.totalorder %s17, 1
      %p144 = por %p142, %p143
      %p145 = scmp.ne.s32.totalorder %s137, %s140
      %p146 = scmp.eq.s32.totalorder %s17, 0
      %p147 = por %p145, %p146
      %p148 = scmp.ne.s32.totalorder %s137, %s140
      %p149 = scmp.eq.s32.totalorder %s22, 1
      %p150 = por %p148, %p149
      %p151 = scmp.ne.s32.totalorder %s140, %s141
      %p152 = scmp.eq.s32.totalorder %s22, 0
      %p153 = por %p151, %p152
      %p154 = scmp.ne.s32.totalorder %s140, %s141
      %p155 = scmp.eq.s32.totalorder %s23, 1
      %p156 = por %p154, %p155
      %p158 = scmp.ne.s32.totalorder %s141, %s157
      %p159 = scmp.eq.s32.totalorder %s23, 0
      %p160 = por %p158, %p159
      %p161 = scmp.le.s32.totalorder 1, %s17
      %p162 = scmp.lt.s32.totalorder %s17, 3
      %p163 = pnand %p161, %p162
      %p164 = pneg %p163
      // Predicated region
      $region9: #{tpu_custom_call.1} parent=5 // pred_check
        _
      $region10: #{tpu_custom_call.1} parent=5 // pred_check_branch
        %166 = sbr.rel (%p163) target = $region12
      $region11: #{tpu_custom_call.1} parent=5 // pred_region
        %s167 = ssub.s32 %s17, 1
        // Predicated region
        $region13: #{tpu_custom_call.1} parent=11 // pred_check
          %p168 = pneg %p64
        $region14: #{tpu_custom_call.1} parent=11 // pred_check_branch
          %170 = sbr.rel (%p168) target = $region16
        $region15: #{tpu_custom_call.1} parent=11 // pred_region
          _
        $region16: #{tpu_custom_call.1} parent=11 // pred_fallthru
          _
        // Predicated region
        $region17: #{tpu_custom_call.1} parent=11 // pred_check
          %p171 = pneg %p85
        $region18: #{tpu_custom_call.1} parent=11 // pred_check_branch
          %173 = sbr.rel (%p171) target = $region20
        $region19: #{tpu_custom_call.1} parent=11 // pred_region
          _
        $region20: #{tpu_custom_call.1} parent=11 // pred_fallthru
          _
        // Predicated region
        $region21: #{tpu_custom_call.1} parent=11 // pred_check
          %p174 = pneg %p106
        $region22: #{tpu_custom_call.1} parent=11 // pred_check_branch
          %176 = sbr.rel (%p174) target = $region24
        $region23: #{tpu_custom_call.1} parent=11 // pred_region
          _
        $region24: #{tpu_custom_call.1} parent=11 // pred_fallthru
          _
        // Predicated region
        $region25: #{tpu_custom_call.1} parent=11 // pred_check
          %p177 = pneg %p127
        $region26: #{tpu_custom_call.1} parent=11 // pred_check_branch
          %179 = sbr.rel (%p177) target = $region28
        $region27: #{tpu_custom_call.1} parent=11 // pred_region
          _
        $region28: #{tpu_custom_call.1} parent=11 // pred_fallthru
          _
      $region12: #{tpu_custom_call.1} parent=5 // pred_fallthru
        _
      %p180 = scmp.lt.s32.totalorder %s17, 2
      // Predicated region
      $region29: #{tpu_custom_call.1} parent=5 // pred_check
        %p181 = pneg %p180
      $region30: #{tpu_custom_call.1} parent=5 // pred_check_branch
        %183 = sbr.rel (%p181) target = $region32
      $region31: #{tpu_custom_call.1} parent=5 // pred_region
        // Predicated region
        $region33: #{tpu_custom_call.1} parent=31 // pred_check
          %p184 = pneg %p37
        $region34: #{tpu_custom_call.1} parent=31 // pred_check_branch
          %186 = sbr.rel (%p184) target = $region36
        $region35: #{tpu_custom_call.1} parent=31 // pred_region
          %s187 = sand.u32 %s27, 1
          %s188 = scalar_lea.sflag [#allocation4], %s187
          %s189 = sand.u32 %s27, 1
          %s190 = smul.addr %s189, 16
          %s191 = scalar_lea.vmem [#allocation3], %s190
          %s193 = ssub.s32 256, 256
          %194 = vsyncadd %s188, %s193
          %s195 = smul.addr %s17, 2
          %s196 = smul.addr %s195, 128
          %s197 = scalar_lea.hbm %s0, %s196
          %s199 = sshll.u32 %s191, 4
          %s200 = int_to_ptr.vmem [resolvable:$true] %s199
          %202 = dma.hbm_to_vmem [thread:$0]  %s197, 256, %s200, %s188
        $region36: #{tpu_custom_call.1} parent=31 // pred_fallthru
          _
      $region32: #{tpu_custom_call.1} parent=5 // pred_fallthru
        _
      %p203 = scmp.le.s32.totalorder 1, %s17
      %p204 = scmp.lt.s32.totalorder %s17, 3
      %p205 = pnand %p203, %p204
      %p206 = pneg %p205
      // Predicated region
      $region37: #{tpu_custom_call.1} parent=5 // pred_check
        _
      $region38: #{tpu_custom_call.1} parent=5 // pred_check_branch
        %208 = sbr.rel (%p205) target = $region40
      $region39: #{tpu_custom_call.1} parent=5 // pred_region
        %s209 = ssub.s32 %s17, 1
        %s210 = sand.u32 %s30, 1
        %s211 = scalar_lea.sflag [#allocation4], %s210
        %s212 = sand.u32 %s30, 1
        %s213 = smul.addr %s212, 16
        %s214 = scalar_lea.vmem [#allocation3], %s213
        // Predicated region
        $region41: #{tpu_custom_call.1} parent=39 // pred_check
          %p215 = pneg %p43
        $region42: #{tpu_custom_call.1} parent=39 // pred_check_branch
          %217 = sbr.rel (%p215) target = $region44
        $region43: #{tpu_custom_call.1} parent=39 // pred_region
          %218 = dma.done %s211, 256
        $region44: #{tpu_custom_call.1} parent=39 // pred_fallthru
          _
        %s219 = sand.u32 %s30, 1
        %s220 = scalar_lea.sflag [#allocation4], %s219
        %s221 = sand.u32 %s30, 1
        %s222 = smul.addr %s221, 16
        %s223 = scalar_lea.vmem [#allocation3], %s222
        %p224 = pneg %p43
        %p225 = pneg %p40
        %p226 = pneg %p64
        %p227 = pneg %p61
        %p228 = pneg %p85
        %p229 = pneg %p82
        %p230 = pneg %p106
        %p231 = pneg %p103
        %p232 = pneg %p127
        %p233 = pneg %p124
        %p234 = pneg %p153
        %p235 = pneg %p150
        %s236 = sand.u32 %s140, 1
        %s237 = scalar_lea.sflag [#allocation5], %s236
        %s238 = sand.u32 %s140, 1
        %s239 = smul.addr %s238, 16
        %s240 = scalar_lea.vmem [#allocation6], %s239
        %v242 = vld [vmem:[%s3] sm:$0xf]
        %v243 = vld [vmem:[%s3 + $0x4] sm:$0xff]
        %v244 = vld [vmem:[%s4] sm:$0x3]
        %v245 = vld [vmem:[%s1] sm:$0x3]
        %v246 = vld [vmem:[%s214] sm:$0xff]
        %v247 = vld [vmem:[%s214 + $0x8] sm:$0xff]
        %v248 = vpack.c.bf16 %v246, %v246
        %v249 = vpack.c.bf16 %v247, %v247
        %251 = vset.pattern.permute.xlu0 0
        %252 = vperm.xlu0 %251, %v242
        %v253 = vpop.permute.xlu0 %252
        %vm255 = vcmask 64512
        %v257 = vsel %vm255, %v245, 0
        %vm259 = vcmask 1043456
        %v261 = vsel %vm259, %v248, 0
        %v264 = vsel %vm259, %v249, 0
        %266 = vmatprep.subr.bf16.mxu0 %v264
        %267 = vmatpush1.bf16.msra.mxu0 %v261
        %268 = vmatprep.subr.bf16.mxu0 0
        %269 = vmatpush1.bf16.msra.mxu0 0
        %270 = vmatprep.subr.bf16.mxu0 0
        %271 = vmatpush1.bf16.msra.mxu0 0
        %272 = vmatprep.subr.bf16.mxu0 0
        %273 = vmatpush1.bf16.msra.mxu0 0
        %274 = vmatprep.subr.bf16.mxu0 0
        %275 = vmatpush1.bf16.msra.mxu0 0
        %276 = vmatprep.subr.bf16.mxu0 0
        %277 = vmatpush1.bf16.msra.mxu0 0
        %278 = vmatprep.subr.bf16.mxu0 0
        %279 = vmatpush1.bf16.msra.mxu0 0
        %280 = vmatprep.subr.bf16.mxu0 0
        %281 = vmatpush1.bf16.msra.mxu0 0
        %282 = vmatprep.subr.bf16.mxu0 0
        %283 = vmatpush1.bf16.msra.mxu0 0
        %284 = vmatprep.subr.bf16.mxu0 0
        %285 = vmatpush1.bf16.msra.mxu0 0
        %286 = vmatprep.subr.bf16.mxu0 0
        %287 = vmatpush1.bf16.msra.mxu0 0
        %288 = vmatprep.subr.bf16.mxu0 0
        %289 = vmatpush1.bf16.msra.mxu0 0
        %290 = vmatprep.subr.bf16.mxu0 0
        %291 = vmatpush1.bf16.msra.mxu0 0
        %292 = vmatprep.subr.bf16.mxu0 0
        %293 = vmatpush1.bf16.msra.mxu0 0
        %294 = vmatprep.subr.bf16.mxu0 0
        %295 = vmatpush1.bf16.msra.mxu0 0
        %296 = vmatprep.subr.bf16.mxu0 0
        %297 = vmatpush1.bf16.msra.mxu0 0
        %298 = vmatprep.mubr.bf16.mxu0 0
        %299 = vmatmul.mubr.bf16.gmra.mrb[0].mxu0 %v257
        %v300 = vpop.f32.mrb[0].mxu0
        %v301 = vadd.f32 %v253, %v300
        %v302 = vpop.f32.mrb[0].mxu0
        %v303 = vadd.f32 %v253, %v302
        %v304 = vpop.f32.mrb[0].mxu0
        %v305 = vpop.f32.mrb[0].mxu0
        %306 = vdwg.mxu0
        %vm307 = vcmp.gt.f32.partialorder %v301, 0.0
        %vm308 = vcmp.gt.f32.partialorder %v303, 0.0
        %v309 = vmul.f32 %v301, 0.1
        %v310 = vmul.f32 %v303, 0.1
        %v311 = vsel %vm307, %v301, %v309
        %v312 = vsel %vm308, %v303, %v310
        %vm313 = vcmask 132096
        %314 = vst.msk [vmem:[#allocation2] sm:$0x3] %vm313, 0
        %vm315 = vcmask 1041544
        %316 = vst.msk [vmem:[#allocation2 + $0x4] sm:$0x3] %vm315, 0
        %v317 = vpack.c.bf16 %v311, %v311
        %v318 = vpack.c.bf16 %v312, %v312
        %v321 = vcombine.low %v317, %v318
        %v323 = vunpack.c.l.s4 1983009808
        %v324 = vunpack.c.0.s8 %v323
        %v325 = vlaneseq
        %v326 = vshrl.u32 %v325, 7
        %v327 = vsub.s32 %v324, %v326
        %v328 = vrot.slane %v321, %v327
        %329 = vrot.lane.b32.xlu0 %v328, 17
        %v330 = vpop.permute.xlu0 %329
        %v331 = vrot.slane %v330, 6
        %vm332 = vcmask 138240
        %v333 = vsel %vm332, %v331, %v330
        %vm335 = vcmask 1043458
        %vm336 = vmor %vm335, %vm315
        %vm337 = vcmask 136196
        %vm338 = vmor %vm337, %vm336
        %339 = vst.msk [vmem:[#allocation2] sm:$0x3f] %vm338, %v333
        %v340 = vld [vmem:[#allocation2] sm:$0xf]
        %v343 = vunpack.c.l.s4 1966171168
        %v344 = vunpack.c.0.s8 %v343
        %v345 = vlaneseq
        %v346 = vshrl.u32 %v345, 7
        %v347 = vsub.s32 %v344, %v346
        %v348 = vrot.slane %v244, %v347
        %v349 = vcombine.high %v348, %v348
        %v351 = vunpack.c.l.s4 1966171168
        %v352 = vunpack.c.0.s8 %v351
        %v353 = vlaneseq
        %v354 = vshrl.u32 %v353, 7
        %v355 = vsub.s32 %v352, %v354
        %v356 = vrot.slane %v348, %v355
        %v358 = vunpack.c.l.s4 1966171168
        %v359 = vunpack.c.0.s8 %v358
        %v360 = vlaneseq
        %v361 = vshrl.u32 %v360, 7
        %v362 = vsub.s32 %v359, %v361
        %v363 = vrot.slane %v349, %v362
        %v365 = vpack.i.b16 %v356, %v356
        %v367 = vlaneseq
        %v368 = vshrl.u32 %v367, 7
        %v369 = vsub.s32 0, %v368
        %v370 = vrot.slane %v365, %v369
        %v372 = vpack.i.b16 %v363, %v363
        %v374 = vlaneseq
        %v375 = vshrl.u32 %v374, 7
        %v376 = vsub.s32 0, %v375
        %v377 = vrot.slane %v372, %v376
        %v380 = vcombine.low %v370, %v377
        %v382 = vunpack.c.l.s4 1983009808
        %v383 = vunpack.c.0.s8 %v382
        %v384 = vlaneseq
        %v385 = vshrl.u32 %v384, 7
        %v386 = vsub.s32 %v383, %v385
        %v387 = vrot.slane %v380, %v386
        %v389 = vmul.bf16 %v340, %v387
        %v390 = vld [vmem:[%s2] sm:$0xf]
        %v391 = vld [vmem:[#allocation2] sm:$0x3f]
        %v393 = vunpack.c.l.b16 %v390
        %v394 = vpack.c.b16 %v393, %v393
        %395 = vrot.lane.b32.xlu0 %v394, 124
        %v396 = vpop.permute.xlu0 %395
        %v398 = vcombine.high %v391, %v391
        %v400 = vunpack.c.l.s4 1983009808
        %v401 = vunpack.c.0.s8 %v400
        %v402 = vlaneseq
        %v403 = vshrl.u32 %v402, 7
        %v404 = vsub.s32 %v401, %v403
        %v405 = vrot.slane %v391, %v404
        %v407 = vunpack.c.l.s4 1983009808
        %v408 = vunpack.c.0.s8 %v407
        %v409 = vlaneseq
        %v410 = vshrl.u32 %v409, 7
        %v411 = vsub.s32 %v408, %v410
        %v412 = vrot.slane %v398, %v411
        %v413 = vcombine.high %v405, %v405
        %414 = vrot.lane.b32.xlu0 %v405, 127
        %v415 = vpop.permute.xlu0 %414
        %416 = vrot.lane.b32.xlu0 %v413, 127
        %v417 = vpop.permute.xlu0 %416
        %418 = vrot.lane.b32.xlu0 %v412, 127
        %v419 = vpop.permute.xlu0 %418
        %vm420 = vcmask 1039360
        %v421 = vsel %vm420, %v415, %v417
        %v422 = vsel %vm420, %v417, %v419
        %vm423 = vcmask 31744
        %v425 = vsel %vm423, %v396, 0
        %vm427 = vcmask 1041408
        %v429 = vsel %vm427, %v421, 0
        %v432 = vsel %vm427, %v422, 0
        %434 = vmatprep.subr.bf16.mxu0 %v432
        %435 = vmatpush1.bf16.msra.mxu0 %v429
        %436 = vmatprep.subr.bf16.mxu0 0
        %437 = vmatpush1.bf16.msra.mxu0 0
        %438 = vmatprep.subr.bf16.mxu0 0
        %439 = vmatpush1.bf16.msra.mxu0 0
        %440 = vmatprep.subr.bf16.mxu0 0
        %441 = vmatpush1.bf16.msra.mxu0 0
        %442 = vmatprep.subr.bf16.mxu0 0
        %443 = vmatpush1.bf16.msra.mxu0 0
        %444 = vmatprep.subr.bf16.mxu0 0
        %445 = vmatpush1.bf16.msra.mxu0 0
        %446 = vmatprep.subr.bf16.mxu0 0
        %447 = vmatpush1.bf16.msra.mxu0 0
        %448 = vmatprep.subr.bf16.mxu0 0
        %449 = vmatpush1.bf16.msra.mxu0 0
        %450 = vmatprep.subr.bf16.mxu0 0
        %451 = vmatpush1.bf16.msra.mxu0 0
        %452 = vmatprep.subr.bf16.mxu0 0
        %453 = vmatpush1.bf16.msra.mxu0 0
        %454 = vmatprep.subr.bf16.mxu0 0
        %455 = vmatpush1.bf16.msra.mxu0 0
        %456 = vmatprep.subr.bf16.mxu0 0
        %457 = vmatpush1.bf16.msra.mxu0 0
        %458 = vmatprep.subr.bf16.mxu0 0
        %459 = vmatpush1.bf16.msra.mxu0 0
        %460 = vmatprep.subr.bf16.mxu0 0
        %461 = vmatpush1.bf16.msra.mxu0 0
        %462 = vmatprep.subr.bf16.mxu0 0
        %463 = vmatpush1.bf16.msra.mxu0 0
        %464 = vmatprep.subr.bf16.mxu0 0
        %465 = vmatpush1.bf16.msra.mxu0 0
        %466 = vmatprep.mubr.bf16.mxu0 0
        %467 = vmatmul.mubr.bf16.gmra.mrb[0].mxu0 %v425
        %v468 = vpop.f32.mrb[0].mxu0
        %v469 = vadd.f32 0.0, %v468
        %v470 = vpop.f32.mrb[0].mxu0
        %v471 = vadd.f32 0.0, %v470
        %v472 = vpop.f32.mrb[0].mxu0
        %v473 = vpop.f32.mrb[0].mxu0
        %474 = vdwg.mxu0
        %v477 = vunpack.c.l.s4 1983009808
        %v478 = vunpack.c.0.s8 %v477
        %v479 = vlaneseq
        %v480 = vshrl.u32 %v479, 7
        %v481 = vsub.s32 %v478, %v480
        %v482 = vrot.slane %v389, %v481
        %v483 = vcombine.high %v482, %v482
        %v485 = vsel %vm423, %v390, 0
        %v488 = vsel %vm427, %v482, 0
        %v491 = vsel %vm427, %v483, 0
        %493 = vmatprep.subr.bf16.mxu0 %v491
        %494 = vmatpush1.bf16.msra.mxu0 %v488
        %495 = vmatprep.subr.bf16.mxu0 0
        %496 = vmatpush1.bf16.msra.mxu0 0
        %497 = vmatprep.subr.bf16.mxu0 0
        %498 = vmatpush1.bf16.msra.mxu0 0
        %499 = vmatprep.subr.bf16.mxu0 0
        %500 = vmatpush1.bf16.msra.mxu0 0
        %501 = vmatprep.subr.bf16.mxu0 0
        %502 = vmatpush1.bf16.msra.mxu0 0
        %503 = vmatprep.subr.bf16.mxu0 0
        %504 = vmatpush1.bf16.msra.mxu0 0
        %505 = vmatprep.subr.bf16.mxu0 0
        %506 = vmatpush1.bf16.msra.mxu0 0
        %507 = vmatprep.subr.bf16.mxu0 0
        %508 = vmatpush1.bf16.msra.mxu0 0
        %509 = vmatprep.subr.bf16.mxu0 0
        %510 = vmatpush1.bf16.msra.mxu0 0
        %511 = vmatprep.subr.bf16.mxu0 0
        %512 = vmatpush1.bf16.msra.mxu0 0
        %513 = vmatprep.subr.bf16.mxu0 0
        %514 = vmatpush1.bf16.msra.mxu0 0
        %515 = vmatprep.subr.bf16.mxu0 0
        %516 = vmatpush1.bf16.msra.mxu0 0
        %517 = vmatprep.subr.bf16.mxu0 0
        %518 = vmatpush1.bf16.msra.mxu0 0
        %519 = vmatprep.subr.bf16.mxu0 0
        %520 = vmatpush1.bf16.msra.mxu0 0
        %521 = vmatprep.subr.bf16.mxu0 0
        %522 = vmatpush1.bf16.msra.mxu0 0
        %523 = vmatprep.subr.bf16.mxu0 0
        %524 = vmatpush1.bf16.msra.mxu0 0
        %525 = vmatprep.mubr.bf16.mxu0 0
        %526 = vmatmul.mubr.bf16.gmra.mrb[0].mxu0 %v485
        %v527 = vpop.f32.mrb[0].mxu0
        %v528 = vadd.f32 %v469, %v527
        %v529 = vpop.f32.mrb[0].mxu0
        %v530 = vadd.f32 %v471, %v529
        %v531 = vpop.f32.mrb[0].mxu0
        %v532 = vpop.f32.mrb[0].mxu0
        %533 = vdwg.mxu0
        %v534 = vld [vmem:[#allocation2] sm:$0x3f]
        %v535 = vshrl.u32 %v356, 16
        %v536 = vpack.i.b16 %v535, %v535
        %v538 = vlaneseq
        %v539 = vshrl.u32 %v538, 7
        %v540 = vsub.s32 0, %v539
        %v541 = vrot.slane %v536, %v540
        %v542 = vshrl.u32 %v363, 16
        %v543 = vpack.i.b16 %v542, %v542
        %v545 = vlaneseq
        %v546 = vshrl.u32 %v545, 7
        %v547 = vsub.s32 0, %v546
        %v548 = vrot.slane %v543, %v547
        %v551 = vcombine.low %v541, %v548
        %v553 = vunpack.c.l.s4 1983009808
        %v554 = vunpack.c.0.s8 %v553
        %v555 = vlaneseq
        %v556 = vshrl.u32 %v555, 7
        %v557 = vsub.s32 %v554, %v556
        %v558 = vrot.slane %v551, %v557
        %559 = vrot.lane.b32.xlu0 %v558, 2
        %v560 = vpop.permute.xlu0 %559
        %v561 = vrot.slane %v560, 6
        %vm562 = vcmask 15360
        %v563 = vsel %vm562, %v561, %v560
        %v565 = vmul.bf16 %v534, %v563
        %v566 = vld [vmem:[%s2] sm:$0xf]
        %v568 = vunpack.c.l.b16 %v566
        %v569 = vpack.c.b16 %v568, %v568
        %570 = vrot.lane.b32.xlu0 %v569, 120
        %v571 = vpop.permute.xlu0 %570
        %v573 = vcombine.high %v565, %v565
        %v575 = vunpack.c.l.s4 1983009808
        %v576 = vunpack.c.0.s8 %v575
        %v577 = vlaneseq
        %v578 = vshrl.u32 %v577, 7
        %v579 = vsub.s32 %v576, %v578
        %v580 = vrot.slane %v565, %v579
        %v582 = vunpack.c.l.s4 1983009808
        %v583 = vunpack.c.0.s8 %v582
        %v584 = vlaneseq
        %v585 = vshrl.u32 %v584, 7
        %v586 = vsub.s32 %v583, %v585
        %v587 = vrot.slane %v573, %v586
        %v588 = vcombine.high %v580, %v580
        %589 = vrot.lane.b32.xlu0 %v580, 126
        %v590 = vpop.permute.xlu0 %589
        %591 = vrot.lane.b32.xlu0 %v588, 126
        %v592 = vpop.permute.xlu0 %591
        %593 = vrot.lane.b32.xlu0 %v587, 126
        %v594 = vpop.permute.xlu0 %593
        %vm595 = vcmask 1031168
        %v596 = vsel %vm595, %v590, %v592
        %v597 = vsel %vm595, %v592, %v594
        %v599 = vsel %vm423, %v571, 0
        %v602 = vsel %vm427, %v596, 0
        %v605 = vsel %vm427, %v597, 0
        %607 = vmatprep.subr.bf16.mxu0 %v605
        %608 = vmatpush1.bf16.msra.mxu0 %v602
        %609 = vmatprep.subr.bf16.mxu0 0
        %610 = vmatpush1.bf16.msra.mxu0 0
        %611 = vmatprep.subr.bf16.mxu0 0
        %612 = vmatpush1.bf16.msra.mxu0 0
        %613 = vmatprep.subr.bf16.mxu0 0
        %614 = vmatpush1.bf16.msra.mxu0 0
        %615 = vmatprep.subr.bf16.mxu0 0
        %616 = vmatpush1.bf16.msra.mxu0 0
        %617 = vmatprep.subr.bf16.mxu0 0
        %618 = vmatpush1.bf16.msra.mxu0 0
        %619 = vmatprep.subr.bf16.mxu0 0
        %620 = vmatpush1.bf16.msra.mxu0 0
        %621 = vmatprep.subr.bf16.mxu0 0
        %622 = vmatpush1.bf16.msra.mxu0 0
        %623 = vmatprep.subr.bf16.mxu0 0
        %624 = vmatpush1.bf16.msra.mxu0 0
        %625 = vmatprep.subr.bf16.mxu0 0
        %626 = vmatpush1.bf16.msra.mxu0 0
        %627 = vmatprep.subr.bf16.mxu0 0
        %628 = vmatpush1.bf16.msra.mxu0 0
        %629 = vmatprep.subr.bf16.mxu0 0
        %630 = vmatpush1.bf16.msra.mxu0 0
        %631 = vmatprep.subr.bf16.mxu0 0
        %632 = vmatpush1.bf16.msra.mxu0 0
        %633 = vmatprep.subr.bf16.mxu0 0
        %634 = vmatpush1.bf16.msra.mxu0 0
        %635 = vmatprep.subr.bf16.mxu0 0
        %636 = vmatpush1.bf16.msra.mxu0 0
        %637 = vmatprep.subr.bf16.mxu0 0
        %638 = vmatpush1.bf16.msra.mxu0 0
        %639 = vmatprep.mubr.bf16.mxu0 0
        %640 = vmatmul.mubr.bf16.gmra.mrb[0].mxu0 %v599
        %v641 = vpop.f32.mrb[0].mxu0
        %v642 = vadd.f32 0.0, %v641
        %v643 = vpop.f32.mrb[0].mxu0
        %v644 = vadd.f32 0.0, %v643
        %v645 = vpop.f32.mrb[0].mxu0
        %v646 = vpop.f32.mrb[0].mxu0
        %647 = vdwg.mxu0
        %v648 = vadd.f32 %v528, %v642
        %v649 = vadd.f32 %v530, %v644
        %v650 = vld [vmem:[#allocation2] sm:$0x3f]
        %651 = vrot.lane.b32.xlu0 %v387, 16
        %v652 = vpop.permute.xlu0 %651
        %v653 = vrot.slane %v652, 6
        %vm654 = vcmask 130048
        %v655 = vsel %vm654, %v653, %v652
        %v657 = vmul.bf16 %v650, %v655
        %v658 = vld [vmem:[%s2] sm:$0xf]
        %v660 = vunpack.c.l.b16 %v658
        %v661 = vpack.c.b16 %v660, %v660
        %662 = vrot.lane.b32.xlu0 %v661, 116
        %v663 = vpop.permute.xlu0 %662
        %v665 = vcombine.high %v657, %v657
        %v667 = vunpack.c.l.s4 1983009808
        %v668 = vunpack.c.0.s8 %v667
        %v669 = vlaneseq
        %v670 = vshrl.u32 %v669, 7
        %v671 = vsub.s32 %v668, %v670
        %v672 = vrot.slane %v657, %v671
        %v674 = vunpack.c.l.s4 1983009808
        %v675 = vunpack.c.0.s8 %v674
        %v676 = vlaneseq
        %v677 = vshrl.u32 %v676, 7
        %v678 = vsub.s32 %v675, %v677
        %v679 = vrot.slane %v665, %v678
        %v680 = vcombine.high %v672, %v672
        %681 = vrot.lane.b32.xlu0 %v672, 112
        %v682 = vpop.permute.xlu0 %681
        %683 = vrot.lane.b32.xlu0 %v680, 112
        %v684 = vpop.permute.xlu0 %683
        %685 = vrot.lane.b32.xlu0 %v679, 112
        %v686 = vpop.permute.xlu0 %685
        %vm687 = vcmask 916480
        %v688 = vsel %vm687, %v682, %v684
        %v689 = vsel %vm687, %v684, %v686
        %v691 = vsel %vm423, %v663, 0
        %v694 = vsel %vm427, %v688, 0
        %v697 = vsel %vm427, %v689, 0
        %699 = vmatprep.subr.bf16.mxu0 %v697
        %700 = vmatpush1.bf16.msra.mxu0 %v694
        %701 = vmatprep.subr.bf16.mxu0 0
        %702 = vmatpush1.bf16.msra.mxu0 0
        %703 = vmatprep.subr.bf16.mxu0 0
        %704 = vmatpush1.bf16.msra.mxu0 0
        %705 = vmatprep.subr.bf16.mxu0 0
        %706 = vmatpush1.bf16.msra.mxu0 0
        %707 = vmatprep.subr.bf16.mxu0 0
        %708 = vmatpush1.bf16.msra.mxu0 0
        %709 = vmatprep.subr.bf16.mxu0 0
        %710 = vmatpush1.bf16.msra.mxu0 0
        %711 = vmatprep.subr.bf16.mxu0 0
        %712 = vmatpush1.bf16.msra.mxu0 0
        %713 = vmatprep.subr.bf16.mxu0 0
        %714 = vmatpush1.bf16.msra.mxu0 0
        %715 = vmatprep.subr.bf16.mxu0 0
        %716 = vmatpush1.bf16.msra.mxu0 0
        %717 = vmatprep.subr.bf16.mxu0 0
        %718 = vmatpush1.bf16.msra.mxu0 0
        %719 = vmatprep.subr.bf16.mxu0 0
        %720 = vmatpush1.bf16.msra.mxu0 0
        %721 = vmatprep.subr.bf16.mxu0 0
        %722 = vmatpush1.bf16.msra.mxu0 0
        %723 = vmatprep.subr.bf16.mxu0 0
        %724 = vmatpush1.bf16.msra.mxu0 0
        %725 = vmatprep.subr.bf16.mxu0 0
        %726 = vmatpush1.bf16.msra.mxu0 0
        %727 = vmatprep.subr.bf16.mxu0 0
        %728 = vmatpush1.bf16.msra.mxu0 0
        %729 = vmatprep.subr.bf16.mxu0 0
        %730 = vmatpush1.bf16.msra.mxu0 0
        %731 = vmatprep.mubr.bf16.mxu0 0
        %732 = vmatmul.mubr.bf16.gmra.mrb[0].mxu0 %v691
        %v733 = vpop.f32.mrb[0].mxu0
        %v734 = vadd.f32 0.0, %v733
        %v735 = vpop.f32.mrb[0].mxu0
        %v736 = vadd.f32 0.0, %v735
        %v737 = vpop.f32.mrb[0].mxu0
        %v738 = vpop.f32.mrb[0].mxu0
        %739 = vdwg.mxu0
        %v740 = vadd.f32 %v648, %v734
        %v741 = vadd.f32 %v649, %v736
        %v742 = vld [vmem:[#allocation2] sm:$0x3f]
        %v743 = vld [vmem:[%s2] sm:$0xf]
        %v745 = vunpack.c.l.b16 %v743
        %v746 = vpack.c.b16 %v745, %v745
        %747 = vrot.lane.b32.xlu0 %v746, 112
        %v748 = vpop.permute.xlu0 %747
        %v750 = vcombine.high %v742, %v742
        %v752 = vunpack.c.l.s4 1983009808
        %v753 = vunpack.c.0.s8 %v752
        %v754 = vlaneseq
        %v755 = vshrl.u32 %v754, 7
        %v756 = vsub.s32 %v753, %v755
        %v757 = vrot.slane %v742, %v756
        %v759 = vunpack.c.l.s4 1983009808
        %v760 = vunpack.c.0.s8 %v759
        %v761 = vlaneseq
        %v762 = vshrl.u32 %v761, 7
        %v763 = vsub.s32 %v760, %v762
        %v764 = vrot.slane %v750, %v763
        %v765 = vcombine.high %v757, %v757
        %766 = vrot.lane.b32.xlu0 %v757, 111
        %v767 = vpop.permute.xlu0 %766
        %768 = vrot.lane.b32.xlu0 %v765, 111
        %v769 = vpop.permute.xlu0 %768
        %770 = vrot.lane.b32.xlu0 %v764, 111
        %v771 = vpop.permute.xlu0 %770
        %vm772 = vcmask 908288
        %v773 = vsel %vm772, %v767, %v769
        %v774 = vsel %vm772, %v769, %v771
        %v776 = vsel %vm423, %v748, 0
        %v779 = vsel %vm427, %v773, 0
        %v782 = vsel %vm427, %v774, 0
        %784 = vmatprep.subr.bf16.mxu0 %v782
        %785 = vmatpush1.bf16.msra.mxu0 %v779
        %786 = vmatprep.subr.bf16.mxu0 0
        %787 = vmatpush1.bf16.msra.mxu0 0
        %788 = vmatprep.subr.bf16.mxu0 0
        %789 = vmatpush1.bf16.msra.mxu0 0
        %790 = vmatprep.subr.bf16.mxu0 0
        %791 = vmatpush1.bf16.msra.mxu0 0
        %792 = vmatprep.subr.bf16.mxu0 0
        %793 = vmatpush1.bf16.msra.mxu0 0
        %794 = vmatprep.subr.bf16.mxu0 0
        %795 = vmatpush1.bf16.msra.mxu0 0
        %796 = vmatprep.subr.bf16.mxu0 0
        %797 = vmatpush1.bf16.msra.mxu0 0
        %798 = vmatprep.subr.bf16.mxu0 0
        %799 = vmatpush1.bf16.msra.mxu0 0
        %800 = vmatprep.subr.bf16.mxu0 0
        %801 = vmatpush1.bf16.msra.mxu0 0
        %802 = vmatprep.subr.bf16.mxu0 0
        %803 = vmatpush1.bf16.msra.mxu0 0
        %804 = vmatprep.subr.bf16.mxu0 0
        %805 = vmatpush1.bf16.msra.mxu0 0
        %806 = vmatprep.subr.bf16.mxu0 0
        %807 = vmatpush1.bf16.msra.mxu0 0
        %808 = vmatprep.subr.bf16.mxu0 0
        %809 = vmatpush1.bf16.msra.mxu0 0
        %810 = vmatprep.subr.bf16.mxu0 0
        %811 = vmatpush1.bf16.msra.mxu0 0
        %812 = vmatprep.subr.bf16.mxu0 0
        %813 = vmatpush1.bf16.msra.mxu0 0
        %814 = vmatprep.subr.bf16.mxu0 0
        %815 = vmatpush1.bf16.msra.mxu0 0
        %816 = vmatprep.mubr.bf16.mxu0 0
        %817 = vmatmul.mubr.bf16.gmra.mrb[0].mxu0 %v776
        %v818 = vpop.f32.mrb[0].mxu0
        %v819 = vadd.f32 0.0, %v818
        %v820 = vpop.f32.mrb[0].mxu0
        %v821 = vadd.f32 0.0, %v820
        %v822 = vpop.f32.mrb[0].mxu0
        %v823 = vpop.f32.mrb[0].mxu0
        %824 = vdwg.mxu0
        %v825 = vadd.f32 %v740, %v819
        %v826 = vadd.f32 %v741, %v821
        %v827 = vld [vmem:[#allocation2] sm:$0x3f]
        %828 = vrot.lane.b32.xlu0 %v558, 18
        %v829 = vpop.permute.xlu0 %828
        %v830 = vrot.slane %v829, 6
        %vm831 = vcmask 146432
        %v832 = vsel %vm831, %v830, %v829
        %v834 = vmul.bf16 %v827, %v832
        %v835 = vld [vmem:[%s2] sm:$0xf]
        %v837 = vunpack.c.l.b16 %v835
        %v838 = vpack.c.b16 %v837, %v837
        %839 = vrot.lane.b32.xlu0 %v838, 108
        %v840 = vpop.permute.xlu0 %839
        %v842 = vcombine.high %v834, %v834
        %v844 = vunpack.c.l.s4 1983009808
        %v845 = vunpack.c.0.s8 %v844
        %v846 = vlaneseq
        %v847 = vshrl.u32 %v846, 7
        %v848 = vsub.s32 %v845, %v847
        %v849 = vrot.slane %v834, %v848
        %v851 = vunpack.c.l.s4 1983009808
        %v852 = vunpack.c.0.s8 %v851
        %v853 = vlaneseq
        %v854 = vshrl.u32 %v853, 7
        %v855 = vsub.s32 %v852, %v854
        %v856 = vrot.slane %v842, %v855
        %v857 = vcombine.high %v849, %v849
        %858 = vrot.lane.b32.xlu0 %v849, 110
        %v859 = vpop.permute.xlu0 %858
        %860 = vrot.lane.b32.xlu0 %v857, 110
        %v861 = vpop.permute.xlu0 %860
        %862 = vrot.lane.b32.xlu0 %v856, 110
        %v863 = vpop.permute.xlu0 %862
        %vm864 = vcmask 900096
        %v865 = vsel %vm864, %v859, %v861
        %v866 = vsel %vm864, %v861, %v863
        %v868 = vsel %vm423, %v840, 0
        %v871 = vsel %vm427, %v865, 0
        %v874 = vsel %vm427, %v866, 0
        %876 = vmatprep.subr.bf16.mxu0 %v874
        %877 = vmatpush1.bf16.msra.mxu0 %v871
        %878 = vmatprep.subr.bf16.mxu0 0
        %879 = vmatpush1.bf16.msra.mxu0 0
        %880 = vmatprep.subr.bf16.mxu0 0
        %881 = vmatpush1.bf16.msra.mxu0 0
        %882 = vmatprep.subr.bf16.mxu0 0
        %883 = vmatpush1.bf16.msra.mxu0 0
        %884 = vmatprep.subr.bf16.mxu0 0
        %885 = vmatpush1.bf16.msra.mxu0 0
        %886 = vmatprep.subr.bf16.mxu0 0
        %887 = vmatpush1.bf16.msra.mxu0 0
        %888 = vmatprep.subr.bf16.mxu0 0
        %889 = vmatpush1.bf16.msra.mxu0 0
        %890 = vmatprep.subr.bf16.mxu0 0
        %891 = vmatpush1.bf16.msra.mxu0 0
        %892 = vmatprep.subr.bf16.mxu0 0
        %893 = vmatpush1.bf16.msra.mxu0 0
        %894 = vmatprep.subr.bf16.mxu0 0
        %895 = vmatpush1.bf16.msra.mxu0 0
        %896 = vmatprep.subr.bf16.mxu0 0
        %897 = vmatpush1.bf16.msra.mxu0 0
        %898 = vmatprep.subr.bf16.mxu0 0
        %899 = vmatpush1.bf16.msra.mxu0 0
        %900 = vmatprep.subr.bf16.mxu0 0
        %901 = vmatpush1.bf16.msra.mxu0 0
        %902 = vmatprep.subr.bf16.mxu0 0
        %903 = vmatpush1.bf16.msra.mxu0 0
        %904 = vmatprep.subr.bf16.mxu0 0
        %905 = vmatpush1.bf16.msra.mxu0 0
        %906 = vmatprep.subr.bf16.mxu0 0
        %907 = vmatpush1.bf16.msra.mxu0 0
        %908 = vmatprep.mubr.bf16.mxu0 0
        %909 = vmatmul.mubr.bf16.gmra.mrb[0].mxu0 %v868
        %v910 = vpop.f32.mrb[0].mxu0
        %v911 = vadd.f32 0.0, %v910
        %v912 = vpop.f32.mrb[0].mxu0
        %v913 = vadd.f32 0.0, %v912
        %v914 = vpop.f32.mrb[0].mxu0
        %v915 = vpop.f32.mrb[0].mxu0
        %916 = vdwg.mxu0
        %v917 = vadd.f32 %v825, %v911
        %v918 = vadd.f32 %v826, %v913
        %v919 = vld [vmem:[#allocation2] sm:$0x3f]
        %920 = vrot.lane.b32.xlu0 %v387, 32
        %v921 = vpop.permute.xlu0 %920
        %v922 = vrot.slane %v921, 6
        %vm923 = vcmask 261120
        %v924 = vsel %vm923, %v922, %v921
        %v926 = vmul.bf16 %v919, %v924
        %v927 = vld [vmem:[%s2] sm:$0xf]
        %v929 = vunpack.c.l.b16 %v927
        %v930 = vpack.c.b16 %v929, %v929
        %931 = vrot.lane.b32.xlu0 %v930, 104
        %v932 = vpop.permute.xlu0 %931
        %v934 = vcombine.high %v926, %v926
        %v936 = vunpack.c.l.s4 1983009808
        %v937 = vunpack.c.0.s8 %v936
        %v938 = vlaneseq
        %v939 = vshrl.u32 %v938, 7
        %v940 = vsub.s32 %v937, %v939
        %v941 = vrot.slane %v926, %v940
        %v943 = vunpack.c.l.s4 1983009808
        %v944 = vunpack.c.0.s8 %v943
        %v945 = vlaneseq
        %v946 = vshrl.u32 %v945, 7
        %v947 = vsub.s32 %v944, %v946
        %v948 = vrot.slane %v934, %v947
        %v949 = vcombine.high %v941, %v941
        %950 = vrot.lane.b32.xlu0 %v941, 96
        %v951 = vpop.permute.xlu0 %950
        %952 = vrot.lane.b32.xlu0 %v949, 96
        %v953 = vpop.permute.xlu0 %952
        %954 = vrot.lane.b32.xlu0 %v948, 96
        %v955 = vpop.permute.xlu0 %954
        %vm956 = vcmask 785408
        %v957 = vsel %vm956, %v951, %v953
        %v958 = vsel %vm956, %v953, %v955
        %v960 = vsel %vm423, %v932, 0
        %v963 = vsel %vm427, %v957, 0
        %v966 = vsel %vm427, %v958, 0
        %968 = vmatprep.subr.bf16.mxu0 %v966
        %969 = vmatpush1.bf16.msra.mxu0 %v963
        %970 = vmatprep.subr.bf16.mxu0 0
        %971 = vmatpush1.bf16.msra.mxu0 0
        %972 = vmatprep.subr.bf16.mxu0 0
        %973 = vmatpush1.bf16.msra.mxu0 0
        %974 = vmatprep.subr.bf16.mxu0 0
        %975 = vmatpush1.bf16.msra.mxu0 0
        %976 = vmatprep.subr.bf16.mxu0 0
        %977 = vmatpush1.bf16.msra.mxu0 0
        %978 = vmatprep.subr.bf16.mxu0 0
        %979 = vmatpush1.bf16.msra.mxu0 0
        %980 = vmatprep.subr.bf16.mxu0 0
        %981 = vmatpush1.bf16.msra.mxu0 0
        %982 = vmatprep.subr.bf16.mxu0 0
        %983 = vmatpush1.bf16.msra.mxu0 0
        %984 = vmatprep.subr.bf16.mxu0 0
        %985 = vmatpush1.bf16.msra.mxu0 0
        %986 = vmatprep.subr.bf16.mxu0 0
        %987 = vmatpush1.bf16.msra.mxu0 0
        %988 = vmatprep.subr.bf16.mxu0 0
        %989 = vmatpush1.bf16.msra.mxu0 0
        %990 = vmatprep.subr.bf16.mxu0 0
        %991 = vmatpush1.bf16.msra.mxu0 0
        %992 = vmatprep.subr.bf16.mxu0 0
        %993 = vmatpush1.bf16.msra.mxu0 0
        %994 = vmatprep.subr.bf16.mxu0 0
        %995 = vmatpush1.bf16.msra.mxu0 0
        %996 = vmatprep.subr.bf16.mxu0 0
        %997 = vmatpush1.bf16.msra.mxu0 0
        %998 = vmatprep.subr.bf16.mxu0 0
        %999 = vmatpush1.bf16.msra.mxu0 0
        %1000 = vmatprep.mubr.bf16.mxu0 0
        %1001 = vmatmul.mubr.bf16.gmra.mrb[0].mxu0 %v960
        %v1002 = vpop.f32.mrb[0].mxu0
        %v1003 = vadd.f32 0.0, %v1002
        %v1004 = vpop.f32.mrb[0].mxu0
        %v1005 = vadd.f32 0.0, %v1004
        %v1006 = vpop.f32.mrb[0].mxu0
        %v1007 = vpop.f32.mrb[0].mxu0
        %1008 = vdwg.mxu0
        %v1009 = vadd.f32 %v917, %v1003
        %v1010 = vadd.f32 %v918, %v1005
        %v1011 = vld [vmem:[#allocation2] sm:$0x3f]
        %v1012 = vld [vmem:[%s2] sm:$0xf]
        %v1014 = vunpack.c.l.b16 %v1012
        %v1015 = vpack.c.b16 %v1014, %v1014
        %1016 = vrot.lane.b32.xlu0 %v1015, 100
        %v1017 = vpop.permute.xlu0 %1016
        %v1019 = vcombine.high %v1011, %v1011
        %v1021 = vunpack.c.l.s4 1983009808
        %v1022 = vunpack.c.0.s8 %v1021
        %v1023 = vlaneseq
        %v1024 = vshrl.u32 %v1023, 7
        %v1025 = vsub.s32 %v1022, %v1024
        %v1026 = vrot.slane %v1011, %v1025
        %v1028 = vunpack.c.l.s4 1983009808
        %v1029 = vunpack.c.0.s8 %v1028
        %v1030 = vlaneseq
        %v1031 = vshrl.u32 %v1030, 7
        %v1032 = vsub.s32 %v1029, %v1031
        %v1033 = vrot.slane %v1019, %v1032
        %v1034 = vcombine.high %v1026, %v1026
        %1035 = vrot.lane.b32.xlu0 %v1026, 95
        %v1036 = vpop.permute.xlu0 %1035
        %1037 = vrot.lane.b32.xlu0 %v1034, 95
        %v1038 = vpop.permute.xlu0 %1037
        %1039 = vrot.lane.b32.xlu0 %v1033, 95
        %v1040 = vpop.permute.xlu0 %1039
        %vm1041 = vcmask 777216
        %v1042 = vsel %vm1041, %v1036, %v1038
        %v1043 = vsel %vm1041, %v1038, %v1040
        %v1045 = vsel %vm423, %v1017, 0
        %v1048 = vsel %vm427, %v1042, 0
        %v1051 = vsel %vm427, %v1043, 0
        %1053 = vmatprep.subr.bf16.mxu0 %v1051
        %1054 = vmatpush1.bf16.msra.mxu0 %v1048
        %1055 = vmatprep.subr.bf16.mxu0 0
        %1056 = vmatpush1.bf16.msra.mxu0 0
        %1057 = vmatprep.subr.bf16.mxu0 0
        %1058 = vmatpush1.bf16.msra.mxu0 0
        %1059 = vmatprep.subr.bf16.mxu0 0
        %1060 = vmatpush1.bf16.msra.mxu0 0
        %1061 = vmatprep.subr.bf16.mxu0 0
        %1062 = vmatpush1.bf16.msra.mxu0 0
        %1063 = vmatprep.subr.bf16.mxu0 0
        %1064 = vmatpush1.bf16.msra.mxu0 0
        %1065 = vmatprep.subr.bf16.mxu0 0
        %1066 = vmatpush1.bf16.msra.mxu0 0
        %1067 = vmatprep.subr.bf16.mxu0 0
        %1068 = vmatpush1.bf16.msra.mxu0 0
        %1069 = vmatprep.subr.bf16.mxu0 0
        %1070 = vmatpush1.bf16.msra.mxu0 0
        %1071 = vmatprep.subr.bf16.mxu0 0
        %1072 = vmatpush1.bf16.msra.mxu0 0
        %1073 = vmatprep.subr.bf16.mxu0 0
        %1074 = vmatpush1.bf16.msra.mxu0 0
        %1075 = vmatprep.subr.bf16.mxu0 0
        %1076 = vmatpush1.bf16.msra.mxu0 0
        %1077 = vmatprep.subr.bf16.mxu0 0
        %1078 = vmatpush1.bf16.msra.mxu0 0
        %1079 = vmatprep.subr.bf16.mxu0 0
        %1080 = vmatpush1.bf16.msra.mxu0 0
        %1081 = vmatprep.subr.bf16.mxu0 0
        %1082 = vmatpush1.bf16.msra.mxu0 0
        %1083 = vmatprep.subr.bf16.mxu0 0
        %1084 = vmatpush1.bf16.msra.mxu0 0
        %1085 = vmatprep.mubr.bf16.mxu0 0
        %1086 = vmatmul.mubr.bf16.gmra.mrb[0].mxu0 %v1045
        %v1087 = vpop.f32.mrb[0].mxu0
        %v1088 = vadd.f32 0.0, %v1087
        %v1089 = vpop.f32.mrb[0].mxu0
        %v1090 = vadd.f32 0.0, %v1089
        %v1091 = vpop.f32.mrb[0].mxu0
        %v1092 = vpop.f32.mrb[0].mxu0
        %1093 = vdwg.mxu0
        %v1094 = vadd.f32 %v1009, %v1088
        %v1095 = vadd.f32 %v1010, %v1090
        %v1096 = vld [vmem:[#allocation2] sm:$0x3f]
        %1097 = vrot.lane.b32.xlu0 %v558, 34
        %v1098 = vpop.permute.xlu0 %1097
        %v1099 = vrot.slane %v1098, 6
        %vm1100 = vcmask 277504
        %v1101 = vsel %vm1100, %v1099, %v1098
        %v1103 = vmul.bf16 %v1096, %v1101
        %v1104 = vld [vmem:[%s2] sm:$0xf]
        %v1106 = vunpack.c.l.b16 %v1104
        %v1107 = vpack.c.b16 %v1106, %v1106
        %1108 = vrot.lane.b32.xlu0 %v1107, 96
        %v1109 = vpop.permute.xlu0 %1108
        %v1111 = vcombine.high %v1103, %v1103
        %v1113 = vunpack.c.l.s4 1983009808
        %v1114 = vunpack.c.0.s8 %v1113
        %v1115 = vlaneseq
        %v1116 = vshrl.u32 %v1115, 7
        %v1117 = vsub.s32 %v1114, %v1116
        %v1118 = vrot.slane %v1103, %v1117
        %v1120 = vunpack.c.l.s4 1983009808
        %v1121 = vunpack.c.0.s8 %v1120
        %v1122 = vlaneseq
        %v1123 = vshrl.u32 %v1122, 7
        %v1124 = vsub.s32 %v1121, %v1123
        %v1125 = vrot.slane %v1111, %v1124
        %v1126 = vcombine.high %v1118, %v1118
        %1127 = vrot.lane.b32.xlu0 %v1118, 94
        %v1128 = vpop.permute.xlu0 %1127
        %1129 = vrot.lane.b32.xlu0 %v1126, 94
        %v1130 = vpop.permute.xlu0 %1129
        %1131 = vrot.lane.b32.xlu0 %v1125, 94
        %v1132 = vpop.permute.xlu0 %1131
        %vm1133 = vcmask 769024
        %v1134 = vsel %vm1133, %v1128, %v1130
        %v1135 = vsel %vm1133, %v1130, %v1132
        %v1137 = vsel %vm423, %v1109, 0
        %v1140 = vsel %vm427, %v1134, 0
        %v1143 = vsel %vm427, %v1135, 0
        %1145 = vmatprep.subr.bf16.mxu0 %v1143
        %1146 = vmatpush1.bf16.msra.mxu0 %v1140
        %1147 = vmatprep.subr.bf16.mxu0 0
        %1148 = vmatpush1.bf16.msra.mxu0 0
        %1149 = vmatprep.subr.bf16.mxu0 0
        %1150 = vmatpush1.bf16.msra.mxu0 0
        %1151 = vmatprep.subr.bf16.mxu0 0
        %1152 = vmatpush1.bf16.msra.mxu0 0
        %1153 = vmatprep.subr.bf16.mxu0 0
        %1154 = vmatpush1.bf16.msra.mxu0 0
        %1155 = vmatprep.subr.bf16.mxu0 0
        %1156 = vmatpush1.bf16.msra.mxu0 0
        %1157 = vmatprep.subr.bf16.mxu0 0
        %1158 = vmatpush1.bf16.msra.mxu0 0
        %1159 = vmatprep.subr.bf16.mxu0 0
        %1160 = vmatpush1.bf16.msra.mxu0 0
        %1161 = vmatprep.subr.bf16.mxu0 0
        %1162 = vmatpush1.bf16.msra.mxu0 0
        %1163 = vmatprep.subr.bf16.mxu0 0
        %1164 = vmatpush1.bf16.msra.mxu0 0
        %1165 = vmatprep.subr.bf16.mxu0 0
        %1166 = vmatpush1.bf16.msra.mxu0 0
        %1167 = vmatprep.subr.bf16.mxu0 0
        %1168 = vmatpush1.bf16.msra.mxu0 0
        %1169 = vmatprep.subr.bf16.mxu0 0
        %1170 = vmatpush1.bf16.msra.mxu0 0
        %1171 = vmatprep.subr.bf16.mxu0 0
        %1172 = vmatpush1.bf16.msra.mxu0 0
        %1173 = vmatprep.subr.bf16.mxu0 0
        %1174 = vmatpush1.bf16.msra.mxu0 0
        %1175 = vmatprep.subr.bf16.mxu0 0
        %1176 = vmatpush1.bf16.msra.mxu0 0
        %1177 = vmatprep.mubr.bf16.mxu0 0
        %1178 = vmatmul.mubr.bf16.gmra.mrb[0].mxu0 %v1137
        %v1179 = vpop.f32.mrb[0].mxu0
        %v1180 = vadd.f32 0.0, %v1179
        %v1181 = vpop.f32.mrb[0].mxu0
        %v1182 = vadd.f32 0.0, %v1181
        %v1183 = vpop.f32.mrb[0].mxu0
        %v1184 = vpop.f32.mrb[0].mxu0
        %1185 = vdwg.mxu0
        %v1186 = vadd.f32 %v1094, %v1180
        %v1187 = vadd.f32 %v1095, %v1182
        %1189 = vset.pattern.permute.xlu0 0
        %1190 = vperm.xlu0 %1189, %v243
        %v1191 = vpop.permute.xlu0 %1190
        %v1193 = vadd.f32 %v1186, %v1191
        %v1194 = vadd.f32 %v1187, %v1191
        %vm1195 = vcmp.gt.f32.partialorder %v1193, 0.0
        %vm1196 = vcmp.gt.f32.partialorder %v1194, 0.0
        %v1197 = vmul.f32 %v1193, 0.1
        %v1198 = vmul.f32 %v1194, 0.1
        %v1199 = vsel %vm1195, %v1193, %v1197
        %v1200 = vsel %vm1196, %v1194, %v1198
        %v1201 = vld [vmem:[%s214] sm:$0xff]
        %v1202 = vld [vmem:[%s214 + $0x8] sm:$0xff]
        %v1203 = vadd.f32 %v1201, %v1199
        %v1204 = vadd.f32 %v1202, %v1200
        %1205 = vst [vmem:[%s240] sm:$0xff] %v1203
        %1206 = vst [vmem:[%s240 + $0x8] sm:$0xff] %v1204
        %s1207 = sand.u32 %s140, 1
        %s1208 = scalar_lea.sflag [#allocation5], %s1207
        %s1209 = sand.u32 %s140, 1
        %s1210 = smul.addr %s1209, 16
        %s1211 = scalar_lea.vmem [#allocation6], %s1210
        // Predicated region
        $region45: #{tpu_custom_call.1} parent=39 // pred_check
          %p1212 = pneg %p150
        $region46: #{tpu_custom_call.1} parent=39 // pred_check_branch
          %1214 = sbr.rel (%p1212) target = $region48
        $region47: #{tpu_custom_call.1} parent=39 // pred_region
          %s1216 = ssub.s32 256, 256
          %1217 = vsyncadd %s1208, %s1216
          %s1218 = smul.addr %s22, 2
          %s1219 = smul.addr %s1218, 128
          %s1220 = scalar_lea.hbm %s5, %s1219
          %s1222 = sshll.u32 %s1211, 4
          %s1223 = int_to_ptr.vmem [resolvable:$true] %s1222
          %1225 = dma.vmem_to_hbm [thread:$0]  %s1223, 256, %s1220, %s1208
        $region48: #{tpu_custom_call.1} parent=39 // pred_fallthru
          _
      $region40: #{tpu_custom_call.1} parent=5 // pred_fallthru
        _
      %p1226 = scmp.le.s32.totalorder 2, %s17
      // Predicated region
      $region49: #{tpu_custom_call.1} parent=5 // pred_check
        %p1227 = pneg %p1226
      $region50: #{tpu_custom_call.1} parent=5 // pred_check_branch
        %1229 = sbr.rel (%p1227) target = $region52
      $region51: #{tpu_custom_call.1} parent=5 // pred_region
        %s1230 = ssub.s32 %s17, 2
        // Predicated region
        $region53: #{tpu_custom_call.1} parent=51 // pred_check
          %p1231 = pneg %p156
        $region54: #{tpu_custom_call.1} parent=51 // pred_check_branch
          %1233 = sbr.rel (%p1231) target = $region56
        $region55: #{tpu_custom_call.1} parent=51 // pred_region
          %s1234 = sand.u32 %s141, 1
          %s1235 = scalar_lea.sflag [#allocation5], %s1234
          %s1236 = sand.u32 %s141, 1
          %s1237 = smul.addr %s1236, 16
          %s1238 = scalar_lea.vmem [#allocation6], %s1237
          %1239 = dma.done %s1235, 256
        $region56: #{tpu_custom_call.1} parent=51 // pred_fallthru
          _
      $region52: #{tpu_custom_call.1} parent=5 // pred_fallthru
        _
    $region6: #{tpu_custom_call.1} parent=1 // loop_footer
      %s21 = sadd.s32 1, %s17
    $region7: #{tpu_custom_call.1} parent=1 // loop_footer_branch
      %16 = sbr.rel target = $region3
    $region8: #{tpu_custom_call.1} parent=1 // loop_exit
      _
    %1240 = vsyncpa [#allocation4], 1
    %s1241 = scalar_lea.sflag [#allocation4], 1
    %1242 = vsyncpa %s1241, 1
    %1243 = vsyncpa [#allocation5], 1
    %s1244 = scalar_lea.sflag [#allocation5], 1
    %1245 = vsyncpa %s1244, 1

</llo_original>
